<compile_context>
chip_gen: v7x
topology: tpu7x:2x2x1
jax: 0.10.0
libtpu: 0.0.40
codegen_flags: <defaults>
</compile_context>

<pallas_src>
import jax
import jax.numpy as jnp
from jax.experimental import pallas as pl
from jax.experimental.pallas import tpu as pltpu


def throtate_kernel(h_th_ref, t_th_ref, r_th_ref, n_th_ref,
                    h_ro_ref, t_ro_ref, r_ro_ref, o_ref):
    """Fused TransH + RotatE score for one (TB, D) batch tile.

    All input refs are (TB, D) float32 in VMEM; o_ref is (TB, 1) float32.
    """
    # --- TransH branch (algebraically simplified hyperplane projection) ---
    h_th = h_th_ref[...]
    t_th = t_th_ref[...]
    r_th = r_th_ref[...]
    n_th = n_th_ref[...]

    d = h_th - t_th                                     # (TB, D)
    s = jnp.sum(d * n_th, axis=-1, keepdims=True)       # (TB, 1) XLU reduce
    diff_th = d + r_th - s * n_th
    score_th = jnp.sqrt(jnp.sum(diff_th * diff_th, axis=-1, keepdims=True))

    # --- RotatE branch ---
    h_ro = h_ro_ref[...]
    t_ro = t_ro_ref[...]
    r_ro = r_ro_ref[...]

    # h*cos(r) + h*sin(r) == h * (cos(r) + sin(r))  (one less D-length mul)
    rot_h = h_ro * (jnp.cos(r_ro) + jnp.sin(r_ro))
    diff_ro = rot_h + r_ro - t_ro
    score_ro = jnp.sqrt(jnp.sum(diff_ro * diff_ro, axis=-1, keepdims=True))

    # Note: lane-width-1 output means masked vst; output bytes are ~1/D of
    # input bytes here, so this is negligible for a memory-bound kernel.
    o_ref[...] = score_th + score_ro


def _pick_tile_b(batch, hidden_dim, *, n_inputs=7, dtype_bytes=4,
                 vmem_budget_bytes=12 * 1024 * 1024):
    """Largest batch tile s.t. double-buffered inputs fit the VMEM budget."""
    tb = vmem_budget_bytes // (2 * n_inputs * hidden_dim * dtype_bytes)
    tb = max(8, min(tb, 2048))
    tb = (tb // 8) * 8                     # f32 sublane multiple
    b_pad8 = ((batch + 7) // 8) * 8
    return min(tb, b_pad8)


def throtate_score(h_th, t_th, r_th, n_th, h_ro, t_ro, r_ro, *, tile_b=None):
    """Calls the fused Pallas kernel on pre-gathered (B, D) embeddings."""
    B, D = h_th.shape
    TB = tile_b if tile_b is not None else _pick_tile_b(B, D)
    num_tiles = pl.cdiv(B, TB)
    B_pad = num_tiles * TB

    def pad(x):
        if B_pad == B:
            return x
        return jnp.pad(x, ((0, B_pad - B), (0, 0)))

    inputs = [pad(x.astype(jnp.float32))
              for x in (h_th, t_th, r_th, n_th, h_ro, t_ro, r_ro)]

    emb_spec = pl.BlockSpec((TB, D), lambda i: (i, 0))
    out = pl.pallas_call(
        throtate_kernel,
        out_shape=jax.ShapeDtypeStruct((B_pad, 1), jnp.float32),
        grid_spec=pl.GridSpec(
            grid=(num_tiles,),
            in_specs=[emb_spec] * 7,
            out_specs=pl.BlockSpec((TB, 1), lambda i: (i, 0)),
        ),
        compiler_params=pltpu.CompilerParams(
            # batch tiles are independent -> let megacore parts shard them
            dimension_semantics=("parallel",),
            # v5e default scoped VMEM is 16 MiB; 32 MiB fits every generation
            vmem_limit_bytes=32 * 1024 * 1024,
        ),
    )(*inputs)
    return out[:B, 0]  # (B,)


def xavier_uniform(key, shape):
    fan_in, fan_out = shape[0], shape[1]
    bound = jnp.sqrt(6.0 / (fan_in + fan_out))
    return jax.random.uniform(key, shape, jnp.float32, -bound, bound)


class THRotatEPallas:
    """JAX/Pallas port of THRotatE = TransH(h,r,t) + RotatE(h,r,t).

    Each sub-model has its OWN embedding tables, matching the PyTorch module.
    """

    def __init__(self, entity_num, relation_num, hidden_dim, key):
        keys = jax.random.split(key, 5)
        # TransH sub-model
        self.th_entity = xavier_uniform(keys[0], (entity_num, hidden_dim))
        self.th_relation = xavier_uniform(keys[1], (relation_num, hidden_dim))
        self.th_normal = xavier_uniform(keys[2], (relation_num, hidden_dim))
        # RotatE sub-model
        self.ro_entity = xavier_uniform(keys[3], (entity_num, hidden_dim))
        self.ro_relation = xavier_uniform(keys[4], (relation_num, hidden_dim))

    def __call__(self, head, relation, tail, *, tile_b=None):
        # Embedding gathers are glue (plain JAX); the fused projection /
        # rotation / norm math is the Pallas hot path.
        return throtate_score(
            self.th_entity[head], self.th_entity[tail],
            self.th_relation[relation], self.th_normal[relation],
            self.ro_entity[head], self.ro_entity[tail],
            self.ro_relation[relation],
            tile_b=tile_b,
        )


if __name__ == "__main__":
    key = jax.random.PRNGKey(0)
    k_params, k_h, k_r, k_t = jax.random.split(key, 4)

    entity_num, relation_num, hidden_dim = 32, 8, 128
    batch = 20  # deliberately not a multiple of the tile to exercise padding

    model = THRotatEPallas(entity_num, relation_num, hidden_dim, k_params)

    head = jax.random.randint(k_h, (batch,), 0, entity_num, dtype=jnp.int32)
    relation = jax.random.randint(k_r, (batch,), 0, relation_num, dtype=jnp.int32)
    tail = jax.random.randint(k_t, (batch,), 0, entity_num, dtype=jnp.int32)

    # force a small tile so the demo exercises the multi-tile pipelined path
    score = model(head, relation, tail, tile_b=8)
    jax.block_until_ready(score)

    # ---- reference check in plain JAX (mirrors the PyTorch forward) ----
    # TransH
    h_th = model.th_entity[head]
    t_th = model.th_entity[tail]
    r_th = model.th_relation[relation]
    n_th = model.th_normal[relation]
    hp = h_th - jnp.sum(h_th * n_th, axis=-1, keepdims=True) * n_th
    tp = t_th - jnp.sum(t_th * n_th, axis=-1, keepdims=True) * n_th
    ref_th = jnp.linalg.norm(hp + r_th - tp, axis=-1)
    # RotatE
    h_ro = model.ro_entity[head]
    t_ro = model.ro_entity[tail]
    r_ro = model.ro_relation[relation]
    rot_h = h_ro * jnp.cos(r_ro) + h_ro * jnp.sin(r_ro)
    ref_ro = jnp.linalg.norm(rot_h + r_ro - t_ro, axis=-1)
    ref = ref_th + ref_ro

    assert score.shape == (batch,)
    assert jnp.allclose(score, ref, atol=1e-5, rtol=1e-5), (
        f"max abs err {jnp.max(jnp.abs(score - ref))}")

    print("KERNEL_OK")
</pallas_src>

<mosaic_0001>
module attributes {stable_mosaic.version = 11 : i64} {
  func.func @throtate_kernel(%arg0: i32, %arg1: memref<8x128xf32, #tpu.memory_space<vmem>>, %arg2: memref<8x128xf32, #tpu.memory_space<vmem>>, %arg3: memref<8x128xf32, #tpu.memory_space<vmem>>, %arg4: memref<8x128xf32, #tpu.memory_space<vmem>>, %arg5: memref<8x128xf32, #tpu.memory_space<vmem>>, %arg6: memref<8x128xf32, #tpu.memory_space<vmem>>, %arg7: memref<8x128xf32, #tpu.memory_space<vmem>>, %arg8: memref<8x1xf32, #tpu.memory_space<vmem>>) attributes {dimension_semantics = [#tpu.dimension_semantics<parallel>], iteration_bounds = array<i64: 3>, scalar_prefetch = 0 : i64, scratch_operands = 0 : i64, tpu.core_type = #tpu.core_type<tc>, window_params = [{transform_indices = @transform_0, window_bounds = array<i64: 8, 128>}, {transform_indices = @transform_1, window_bounds = array<i64: 8, 128>}, {transform_indices = @transform_2, window_bounds = array<i64: 8, 128>}, {transform_indices = @transform_3, window_bounds = array<i64: 8, 128>}, {transform_indices = @transform_4, window_bounds = array<i64: 8, 128>}, {transform_indices = @transform_5, window_bounds = array<i64: 8, 128>}, {transform_indices = @transform_6, window_bounds = array<i64: 8, 128>}, {transform_indices = @transform_7, window_bounds = array<i64: 8, 1>}]} {
    %c0 = arith.constant 0 : index
    %c0_0 = arith.constant 0 : index
    %0 = vector.load %arg1[%c0, %c0_0] : memref<8x128xf32, #tpu.memory_space<vmem>>, vector<8x128xf32>
    %c0_1 = arith.constant 0 : index
    %c0_2 = arith.constant 0 : index
    %1 = vector.load %arg2[%c0_1, %c0_2] : memref<8x128xf32, #tpu.memory_space<vmem>>, vector<8x128xf32>
    %c0_3 = arith.constant 0 : index
    %c0_4 = arith.constant 0 : index
    %2 = vector.load %arg3[%c0_3, %c0_4] : memref<8x128xf32, #tpu.memory_space<vmem>>, vector<8x128xf32>
    %c0_5 = arith.constant 0 : index
    %c0_6 = arith.constant 0 : index
    %3 = vector.load %arg4[%c0_5, %c0_6] : memref<8x128xf32, #tpu.memory_space<vmem>>, vector<8x128xf32>
    %4 = arith.subf %0, %1 : vector<8x128xf32>
    %5 = arith.mulf %4, %3 : vector<8x128xf32>
    %cst = arith.constant dense<0.000000e+00> : vector<8xf32>
    %6 = vector.multi_reduction <add>, %5, %cst [1] : vector<8x128xf32> to vector<8xf32>
    %7 = vector.shape_cast %6 : vector<8xf32> to vector<8x1xf32>
    %8 = arith.addf %4, %2 : vector<8x128xf32>
    %9 = vector.broadcast %7 : vector<8x1xf32> to vector<8x128xf32>
    %10 = arith.mulf %9, %3 : vector<8x128xf32>
    %11 = arith.subf %8, %10 : vector<8x128xf32>
    %12 = arith.mulf %11, %11 : vector<8x128xf32>
    %cst_7 = arith.constant dense<0.000000e+00> : vector<8xf32>
    %13 = vector.multi_reduction <add>, %12, %cst_7 [1] : vector<8x128xf32> to vector<8xf32>
    %14 = vector.shape_cast %13 : vector<8xf32> to vector<8x1xf32>
    %15 = math.sqrt %14 : vector<8x1xf32>
    %c0_8 = arith.constant 0 : index
    %c0_9 = arith.constant 0 : index
    %16 = vector.load %arg5[%c0_8, %c0_9] : memref<8x128xf32, #tpu.memory_space<vmem>>, vector<8x128xf32>
    %c0_10 = arith.constant 0 : index
    %c0_11 = arith.constant 0 : index
    %17 = vector.load %arg6[%c0_10, %c0_11] : memref<8x128xf32, #tpu.memory_space<vmem>>, vector<8x128xf32>
    %c0_12 = arith.constant 0 : index
    %c0_13 = arith.constant 0 : index
    %18 = vector.load %arg7[%c0_12, %c0_13] : memref<8x128xf32, #tpu.memory_space<vmem>>, vector<8x128xf32>
    %19 = math.cos %18 : vector<8x128xf32>
    %20 = math.sin %18 : vector<8x128xf32>
    %21 = arith.addf %19, %20 : vector<8x128xf32>
    %22 = arith.mulf %16, %21 : vector<8x128xf32>
    %23 = arith.addf %22, %18 : vector<8x128xf32>
    %24 = arith.subf %23, %17 : vector<8x128xf32>
    %25 = arith.mulf %24, %24 : vector<8x128xf32>
    %cst_14 = arith.constant dense<0.000000e+00> : vector<8xf32>
    %26 = vector.multi_reduction <add>, %25, %cst_14 [1] : vector<8x128xf32> to vector<8xf32>
    %27 = vector.shape_cast %26 : vector<8xf32> to vector<8x1xf32>
    %28 = math.sqrt %27 : vector<8x1xf32>
    %29 = arith.addf %15, %28 : vector<8x1xf32>
    %c0_15 = arith.constant 0 : index
    %c0_16 = arith.constant 0 : index
    %30 = vector.load %arg8[%c0_15, %c0_16] : memref<8x1xf32, #tpu.memory_space<vmem>>, vector<8x1xf32>
    tpu.vector_store %arg8[%c0_15, %c0_16], %29 {strides = array<i32>} : memref<8x1xf32, #tpu.memory_space<vmem>>, vector<8x1xf32>,
    return
  }
  func.func @transform_0(%arg0: i32) -> (i32, i32) {
    %c0_i32 = arith.constant 0 : i32
    %c0_i32_0 = arith.constant 0 : i32
    return %arg0, %c0_i32 : i32, i32
  }
  func.func @transform_1(%arg0: i32) -> (i32, i32) {
    %c0_i32 = arith.constant 0 : i32
    %c0_i32_0 = arith.constant 0 : i32
    return %arg0, %c0_i32 : i32, i32
  }
  func.func @transform_2(%arg0: i32) -> (i32, i32) {
    %c0_i32 = arith.constant 0 : i32
    %c0_i32_0 = arith.constant 0 : i32
    return %arg0, %c0_i32 : i32, i32
  }
  func.func @transform_3(%arg0: i32) -> (i32, i32) {
    %c0_i32 = arith.constant 0 : i32
    %c0_i32_0 = arith.constant 0 : i32
    return %arg0, %c0_i32 : i32, i32
  }
  func.func @transform_4(%arg0: i32) -> (i32, i32) {
    %c0_i32 = arith.constant 0 : i32
    %c0_i32_0 = arith.constant 0 : i32
    return %arg0, %c0_i32 : i32, i32
  }
  func.func @transform_5(%arg0: i32) -> (i32, i32) {
    %c0_i32 = arith.constant 0 : i32
    %c0_i32_0 = arith.constant 0 : i32
    return %arg0, %c0_i32 : i32, i32
  }
  func.func @transform_6(%arg0: i32) -> (i32, i32) {
    %c0_i32 = arith.constant 0 : i32
    %c0_i32_0 = arith.constant 0 : i32
    return %arg0, %c0_i32 : i32, i32
  }
  func.func @transform_7(%arg0: i32) -> (i32, i32) {
    %c0_i32 = arith.constant 0 : i32
    %c0_i32_0 = arith.constant 0 : i32
    return %arg0, %c0_i32 : i32, i32
  }
}

</mosaic_0001>

<llo_original>
// kernel: tpu_custom_call.1
$region0: #{tpu_custom_call.1}
  #allocation0 [shape = 'u32[]', space=smem, size = 0x4, offset = 0x4, fixed_abs, tag = 'smem constant byte address 0x4 - core index']
  #allocation1 [shape = 'u32[144,128]{1,0:T(1,128)}', space=vmem, size = 0x12000, scoped, tag = 'internal scratch']
  %s0 = inlined_call_operand.hbm [shape: f32[24,128], index: 0, kind: input, shape index: {}]
  %s1 = inlined_call_operand.hbm [shape: f32[24,128], index: 1, kind: input, shape index: {}]
  %s2 = inlined_call_operand.hbm [shape: f32[24,128], index: 2, kind: input, shape index: {}]
  %s3 = inlined_call_operand.hbm [shape: f32[24,128], index: 3, kind: input, shape index: {}]
  %s4 = inlined_call_operand.hbm [shape: f32[24,128], index: 4, kind: input, shape index: {}]
  %s5 = inlined_call_operand.hbm [shape: f32[24,128], index: 5, kind: input, shape index: {}]
  %s6 = inlined_call_operand.hbm [shape: f32[24,128], index: 6, kind: input, shape index: {}]
  %s7 = inlined_call_operand.vmem [shape: f32[24,1], index: 7, kind: output, shape index: {}]
  %s8 = sld [smem:[#allocation0]]
  $region89: #{tpu_custom_call.1} parent=0
    _
  %s10 = ssub.s32 1, %s8
  %s11 = scalar_select 0, %s10, %s8
  $region1: #{tpu_custom_call.1} parent=0
    #allocation2 [shape = 'u8[8192]{0}', space=vmem, size = 0x2000, scoped, tag = 'input window, operand 0']
    #allocation3 [shape = 's32[2]{0}', space=sflag, size = 0x8, scoped, tag = 'scoped memory for tpu_custom_call.1']
    #allocation4 [shape = 'u8[8192]{0}', space=vmem, size = 0x2000, scoped, tag = 'input window, operand 1']
    #allocation5 [shape = 's32[2]{0}', space=sflag, size = 0x8, scoped, tag = 'scoped memory for tpu_custom_call.1']
    #allocation6 [shape = 'u8[8192]{0}', space=vmem, size = 0x2000, scoped, tag = 'input window, operand 2']
    #allocation7 [shape = 'u8[8192]{0}', space=vmem, size = 0x2000, scoped, tag = 'input window, operand 3']
    #allocation8 [shape = 's32[2]{0}', space=sflag, size = 0x8, scoped, tag = 'scoped memory for tpu_custom_call.1']
    #allocation9 [shape = 'u8[8192]{0}', space=vmem, size = 0x2000, scoped, tag = 'input window, operand 4']
    #allocation10 [shape = 'u8[8192]{0}', space=vmem, size = 0x2000, scoped, tag = 'input window, operand 5']
    #allocation11 [shape = 's32[2]{0}', space=sflag, size = 0x8, scoped, tag = 'scoped memory for tpu_custom_call.1']
    #allocation12 [shape = 'u8[8192]{0}', space=vmem, size = 0x2000, scoped, tag = 'input window, operand 6']
    %12 = vsyncpa [#allocation3], 0
    %s13 = scalar_lea.sflag [#allocation3], 1
    %14 = vsyncpa %s13, 0
    %15 = vsyncpa [#allocation5], 0
    %s16 = scalar_lea.sflag [#allocation5], 1
    %17 = vsyncpa %s16, 0
    %18 = vsyncpa [#allocation8], 0
    %s19 = scalar_lea.sflag [#allocation8], 1
    %20 = vsyncpa %s19, 0
    %21 = vsyncpa [#allocation11], 0
    %s22 = scalar_lea.sflag [#allocation11], 1
    %23 = vsyncpa %s22, 0
    loop: start=0, step=1, limit=5
    $region2: #{tpu_custom_call.1} parent=1 // loop_pre_header
      _
    $region3: #{tpu_custom_call.1} parent=1 // loop_header
      %s25 = sphi 0, %s29
      %p26 = scmp.ge.s32.totalorder %s25, 5
      %s35 = sphi 0, %s37
      %s38 = sphi 0, %s35
      %s39 = sphi 0, %s38
      %s55 = sphi 0, %s39
      %s61 = sphi 0, %s63
      %s64 = sphi 0, %s61
      %s65 = sphi 0, %s64
      %s81 = sphi 0, %s65
      %s87 = sphi 0, %s89
      %s90 = sphi 0, %s87
      %s91 = sphi 0, %s90
      %s107 = sphi 0, %s91
      %s113 = sphi 0, %s115
      %s116 = sphi 0, %s113
      %s117 = sphi 0, %s116
      %s133 = sphi 0, %s117
      %s139 = sphi 0, %s141
      %s142 = sphi 0, %s139
      %s143 = sphi 0, %s142
      %s159 = sphi 0, %s143
      %s165 = sphi 0, %s167
      %s168 = sphi 0, %s165
      %s169 = sphi 0, %s168
      %s185 = sphi 0, %s169
      %s191 = sphi 0, %s193
      %s194 = sphi 0, %s191
      %s195 = sphi 0, %s194
      %s211 = sphi 0, %s195
      %s217 = sphi 0, %s219
      %s220 = sphi 0, %s217
      %s221 = sphi 0, %s220
      %s237 = sphi 0, %s221
    $region4: #{tpu_custom_call.1} parent=1 // loop_header_branch
      %28 = sbr.rel (%p26) target = $region8
    $region5: #{tpu_custom_call.1} parent=1 // loop_body
      %s30 = ssub.s32 %s25, 1
      %s31 = ssub.s32 %s25, 2
      %s32 = sadd.s32 %s25, 1
      %s33 = ssub.s32 %s25, %s32
      %p34 = scmp.eq.s32.totalorder %s33, 0
      %s36 = sadd.s32 %s35, 1
      %s37 = scalar_select %p34, %s35, %s36
      %p40 = pneg %p34
      %p41 = scmp.eq.s32.totalorder %s25, 2
      %p42 = por %p40, %p41
      %p43 = scmp.ne.s32.totalorder %s35, %s38
      %p44 = scmp.eq.s32.totalorder %s25, 0
      %p45 = por %p43, %p44
      %p46 = scmp.ne.s32.totalorder %s35, %s38
      %p47 = scmp.eq.s32.totalorder %s30, 2
      %p48 = por %p46, %p47
      %p49 = scmp.ne.s32.totalorder %s38, %s39
      %p50 = scmp.eq.s32.totalorder %s30, 0
      %p51 = por %p49, %p50
      %p52 = scmp.ne.s32.totalorder %s38, %s39
      %p53 = scmp.eq.s32.totalorder %s31, 2
      %p54 = por %p52, %p53
      %p56 = scmp.ne.s32.totalorder %s39, %s55
      %p57 = scmp.eq.s32.totalorder %s31, 0
      %p58 = por %p56, %p57
      %s59 = ssub.s32 %s25, %s32
      %p60 = scmp.eq.s32.totalorder %s59, 0
      %s62 = sadd.s32 %s61, 1
      %s63 = scalar_select %p60, %s61, %s62
      %p66 = pneg %p60
      %p67 = scmp.eq.s32.totalorder %s25, 2
      %p68 = por %p66, %p67
      %p69 = scmp.ne.s32.totalorder %s61, %s64
      %p70 = scmp.eq.s32.totalorder %s25, 0
      %p71 = por %p69, %p70
      %p72 = scmp.ne.s32.totalorder %s61, %s64
      %p73 = scmp.eq.s32.totalorder %s30, 2
      %p74 = por %p72, %p73
      %p75 = scmp.ne.s32.totalorder %s64, %s65
      %p76 = scmp.eq.s32.totalorder %s30, 0
      %p77 = por %p75, %p76
      %p78 = scmp.ne.s32.totalorder %s64, %s65
      %p79 = scmp.eq.s32.totalorder %s31, 2
      %p80 = por %p78, %p79
      %p82 = scmp.ne.s32.totalorder %s65, %s81
      %p83 = scmp.eq.s32.totalorder %s31, 0
      %p84 = por %p82, %p83
      %s85 = ssub.s32 %s25, %s32
      %p86 = scmp.eq.s32.totalorder %s85, 0
      %s88 = sadd.s32 %s87, 1
      %s89 = scalar_select %p86, %s87, %s88
      %p92 = pneg %p86
      %p93 = scmp.eq.s32.totalorder %s25, 2
      %p94 = por %p92, %p93
      %p95 = scmp.ne.s32.totalorder %s87, %s90
      %p96 = scmp.eq.s32.totalorder %s25, 0
      %p97 = por %p95, %p96
      %p98 = scmp.ne.s32.totalorder %s87, %s90
      %p99 = scmp.eq.s32.totalorder %s30, 2
      %p100 = por %p98, %p99
      %p101 = scmp.ne.s32.totalorder %s90, %s91
      %p102 = scmp.eq.s32.totalorder %s30, 0
      %p103 = por %p101, %p102
      %p104 = scmp.ne.s32.totalorder %s90, %s91
      %p105 = scmp.eq.s32.totalorder %s31, 2
      %p106 = por %p104, %p105
      %p108 = scmp.ne.s32.totalorder %s91, %s107
      %p109 = scmp.eq.s32.totalorder %s31, 0
      %p110 = por %p108, %p109
      %s111 = ssub.s32 %s25, %s32
      %p112 = scmp.eq.s32.totalorder %s111, 0
      %s114 = sadd.s32 %s113, 1
      %s115 = scalar_select %p112, %s113, %s114
      %p118 = pneg %p112
      %p119 = scmp.eq.s32.totalorder %s25, 2
      %p120 = por %p118, %p119
      %p121 = scmp.ne.s32.totalorder %s113, %s116
      %p122 = scmp.eq.s32.totalorder %s25, 0
      %p123 = por %p121, %p122
      %p124 = scmp.ne.s32.totalorder %s113, %s116
      %p125 = scmp.eq.s32.totalorder %s30, 2
      %p126 = por %p124, %p125
      %p127 = scmp.ne.s32.totalorder %s116, %s117
      %p128 = scmp.eq.s32.totalorder %s30, 0
      %p129 = por %p127, %p128
      %p130 = scmp.ne.s32.totalorder %s116, %s117
      %p131 = scmp.eq.s32.totalorder %s31, 2
      %p132 = por %p130, %p131
      %p134 = scmp.ne.s32.totalorder %s117, %s133
      %p135 = scmp.eq.s32.totalorder %s31, 0
      %p136 = por %p134, %p135
      %s137 = ssub.s32 %s25, %s32
      %p138 = scmp.eq.s32.totalorder %s137, 0
      %s140 = sadd.s32 %s139, 1
      %s141 = scalar_select %p138, %s139, %s140
      %p144 = pneg %p138
      %p145 = scmp.eq.s32.totalorder %s25, 2
      %p146 = por %p144, %p145
      %p147 = scmp.ne.s32.totalorder %s139, %s142
      %p148 = scmp.eq.s32.totalorder %s25, 0
      %p149 = por %p147, %p148
      %p150 = scmp.ne.s32.totalorder %s139, %s142
      %p151 = scmp.eq.s32.totalorder %s30, 2
      %p152 = por %p150, %p151
      %p153 = scmp.ne.s32.totalorder %s142, %s143
      %p154 = scmp.eq.s32.totalorder %s30, 0
      %p155 = por %p153, %p154
      %p156 = scmp.ne.s32.totalorder %s142, %s143
      %p157 = scmp.eq.s32.totalorder %s31, 2
      %p158 = por %p156, %p157
      %p160 = scmp.ne.s32.totalorder %s143, %s159
      %p161 = scmp.eq.s32.totalorder %s31, 0
      %p162 = por %p160, %p161
      %s163 = ssub.s32 %s25, %s32
      %p164 = scmp.eq.s32.totalorder %s163, 0
      %s166 = sadd.s32 %s165, 1
      %s167 = scalar_select %p164, %s165, %s166
      %p170 = pneg %p164
      %p171 = scmp.eq.s32.totalorder %s25, 2
      %p172 = por %p170, %p171
      %p173 = scmp.ne.s32.totalorder %s165, %s168
      %p174 = scmp.eq.s32.totalorder %s25, 0
      %p175 = por %p173, %p174
      %p176 = scmp.ne.s32.totalorder %s165, %s168
      %p177 = scmp.eq.s32.totalorder %s30, 2
      %p178 = por %p176, %p177
      %p179 = scmp.ne.s32.totalorder %s168, %s169
      %p180 = scmp.eq.s32.totalorder %s30, 0
      %p181 = por %p179, %p180
      %p182 = scmp.ne.s32.totalorder %s168, %s169
      %p183 = scmp.eq.s32.totalorder %s31, 2
      %p184 = por %p182, %p183
      %p186 = scmp.ne.s32.totalorder %s169, %s185
      %p187 = scmp.eq.s32.totalorder %s31, 0
      %p188 = por %p186, %p187
      %s189 = ssub.s32 %s25, %s32
      %p190 = scmp.eq.s32.totalorder %s189, 0
      %s192 = sadd.s32 %s191, 1
      %s193 = scalar_select %p190, %s191, %s192
      %p196 = pneg %p190
      %p197 = scmp.eq.s32.totalorder %s25, 2
      %p198 = por %p196, %p197
      %p199 = scmp.ne.s32.totalorder %s191, %s194
      %p200 = scmp.eq.s32.totalorder %s25, 0
      %p201 = por %p199, %p200
      %p202 = scmp.ne.s32.totalorder %s191, %s194
      %p203 = scmp.eq.s32.totalorder %s30, 2
      %p204 = por %p202, %p203
      %p205 = scmp.ne.s32.totalorder %s194, %s195
      %p206 = scmp.eq.s32.totalorder %s30, 0
      %p207 = por %p205, %p206
      %p208 = scmp.ne.s32.totalorder %s194, %s195
      %p209 = scmp.eq.s32.totalorder %s31, 2
      %p210 = por %p208, %p209
      %p212 = scmp.ne.s32.totalorder %s195, %s211
      %p213 = scmp.eq.s32.totalorder %s31, 0
      %p214 = por %p212, %p213
      %s215 = ssub.s32 %s25, %s32
      %p216 = scmp.eq.s32.totalorder %s215, 0
      %s218 = sadd.s32 %s217, 1
      %s219 = scalar_select %p216, %s217, %s218
      %p222 = pneg %p216
      %p223 = scmp.eq.s32.totalorder %s25, 2
      %p224 = por %p222, %p223
      %p225 = scmp.ne.s32.totalorder %s217, %s220
      %p226 = scmp.eq.s32.totalorder %s25, 0
      %p227 = por %p225, %p226
      %p228 = scmp.ne.s32.totalorder %s217, %s220
      %p229 = scmp.eq.s32.totalorder %s30, 2
      %p230 = por %p228, %p229
      %p231 = scmp.ne.s32.totalorder %s220, %s221
      %p232 = scmp.eq.s32.totalorder %s30, 0
      %p233 = por %p231, %p232
      %p234 = scmp.ne.s32.totalorder %s220, %s221
      %p235 = scmp.eq.s32.totalorder %s31, 2
      %p236 = por %p234, %p235
      %p238 = scmp.ne.s32.totalorder %s221, %s237
      %p239 = scmp.eq.s32.totalorder %s31, 0
      %p240 = por %p238, %p239
      %p241 = scmp.le.s32.totalorder 1, %s25
      %p242 = scmp.lt.s32.totalorder %s25, 4
      %p243 = pnand %p241, %p242
      %p244 = pneg %p243
      // Predicated region
      $region9: #{tpu_custom_call.1} parent=5 // pred_check
        _
      $region10: #{tpu_custom_call.1} parent=5 // pred_check_branch
        %246 = sbr.rel (%p243) target = $region12
      $region11: #{tpu_custom_call.1} parent=5 // pred_region
        %s247 = ssub.s32 %s25, 1
      $region12: #{tpu_custom_call.1} parent=5 // pred_fallthru
        _
      %p248 = scmp.lt.s32.totalorder %s25, 3
      // Predicated region
      $region13: #{tpu_custom_call.1} parent=5 // pred_check
        %p249 = pneg %p248
      $region14: #{tpu_custom_call.1} parent=5 // pred_check_branch
        %251 = sbr.rel (%p249) target = $region16
      $region15: #{tpu_custom_call.1} parent=5 // pred_region
        // Predicated region
        $region17: #{tpu_custom_call.1} parent=15 // pred_check
          %p252 = pneg %p45
        $region18: #{tpu_custom_call.1} parent=15 // pred_check_branch
          %254 = sbr.rel (%p252) target = $region20
        $region19: #{tpu_custom_call.1} parent=15 // pred_region
          %s255 = sand.u32 %s35, 1
          %s256 = scalar_lea.sflag [#allocation3], %s255
          %s257 = sand.u32 %s35, 1
          %s258 = smul.addr %s257, 8
          %s259 = scalar_lea.vmem [#allocation2], %s258
          %s261 = ssub.s32 128, 128
          %262 = vsyncadd %s256, %s261
          %s263 = smul.addr %s25, 128
          %s264 = scalar_lea.hbm %s0, %s263
          %s266 = sshll.u32 %s259, 4
          %s267 = int_to_ptr.vmem [resolvable:$true] %s266
          %269 = dma.hbm_to_vmem [thread:$0]  %s264, 128, %s267, %s256
        $region20: #{tpu_custom_call.1} parent=15 // pred_fallthru
          _
        // Predicated region
        $region21: #{tpu_custom_call.1} parent=15 // pred_check
          %p270 = pneg %p71
        $region22: #{tpu_custom_call.1} parent=15 // pred_check_branch
          %272 = sbr.rel (%p270) target = $region24
        $region23: #{tpu_custom_call.1} parent=15 // pred_region
          %s273 = sand.u32 %s25, 1
          %s274 = scalar_lea.sflag [#allocation5], %s273
          %s275 = sand.u32 %s61, 1
          %s276 = smul.addr %s275, 8
          %s277 = scalar_lea.vmem [#allocation4], %s276
          %s279 = ssub.s32 128, 128
          %280 = vsyncadd %s274, %s279
          %s281 = smul.addr %s25, 128
          %s282 = scalar_lea.hbm %s1, %s281
          %s284 = sshll.u32 %s277, 4
          %s285 = int_to_ptr.vmem [resolvable:$true] %s284
          %287 = dma.hbm_to_vmem [thread:$0]  %s282, 128, %s285, %s274
        $region24: #{tpu_custom_call.1} parent=15 // pred_fallthru
          _
        // Predicated region
        $region25: #{tpu_custom_call.1} parent=15 // pred_check
          %p288 = pneg %p97
        $region26: #{tpu_custom_call.1} parent=15 // pred_check_branch
          %290 = sbr.rel (%p288) target = $region28
        $region27: #{tpu_custom_call.1} parent=15 // pred_region
          %s291 = sand.u32 %s25, 1
          %s292 = scalar_lea.sflag [#allocation5], %s291
          %s293 = sand.u32 %s87, 1
          %s294 = smul.addr %s293, 8
          %s295 = scalar_lea.vmem [#allocation6], %s294
          %s297 = ssub.s32 128, 128
          %298 = vsyncadd %s292, %s297
          %s299 = smul.addr %s25, 128
          %s300 = scalar_lea.hbm %s2, %s299
          %s302 = sshll.u32 %s295, 4
          %s303 = int_to_ptr.vmem [resolvable:$true] %s302
          %305 = dma.hbm_to_vmem [thread:$0]  %s300, 128, %s303, %s292
        $region28: #{tpu_custom_call.1} parent=15 // pred_fallthru
          _
        // Predicated region
        $region29: #{tpu_custom_call.1} parent=15 // pred_check
          %p306 = pneg %p123
        $region30: #{tpu_custom_call.1} parent=15 // pred_check_branch
          %308 = sbr.rel (%p306) target = $region32
        $region31: #{tpu_custom_call.1} parent=15 // pred_region
          %s309 = sand.u32 %s25, 1
          %s310 = scalar_lea.sflag [#allocation8], %s309
          %s311 = sand.u32 %s113, 1
          %s312 = smul.addr %s311, 8
          %s313 = scalar_lea.vmem [#allocation7], %s312
          %s315 = ssub.s32 128, 128
          %316 = vsyncadd %s310, %s315
          %s317 = smul.addr %s25, 128
          %s318 = scalar_lea.hbm %s3, %s317
          %s320 = sshll.u32 %s313, 4
          %s321 = int_to_ptr.vmem [resolvable:$true] %s320
          %323 = dma.hbm_to_vmem [thread:$0]  %s318, 128, %s321, %s310
        $region32: #{tpu_custom_call.1} parent=15 // pred_fallthru
          _
        // Predicated region
        $region33: #{tpu_custom_call.1} parent=15 // pred_check
          %p324 = pneg %p149
        $region34: #{tpu_custom_call.1} parent=15 // pred_check_branch
          %326 = sbr.rel (%p324) target = $region36
        $region35: #{tpu_custom_call.1} parent=15 // pred_region
          %s327 = sand.u32 %s25, 1
          %s328 = scalar_lea.sflag [#allocation8], %s327
          %s329 = sand.u32 %s139, 1
          %s330 = smul.addr %s329, 8
          %s331 = scalar_lea.vmem [#allocation9], %s330
          %s333 = ssub.s32 128, 128
          %334 = vsyncadd %s328, %s333
          %s335 = smul.addr %s25, 128
          %s336 = scalar_lea.hbm %s4, %s335
          %s338 = sshll.u32 %s331, 4
          %s339 = int_to_ptr.vmem [resolvable:$true] %s338
          %341 = dma.hbm_to_vmem [thread:$0]  %s336, 128, %s339, %s328
        $region36: #{tpu_custom_call.1} parent=15 // pred_fallthru
          _
        // Predicated region
        $region37: #{tpu_custom_call.1} parent=15 // pred_check
          %p342 = pneg %p175
        $region38: #{tpu_custom_call.1} parent=15 // pred_check_branch
          %344 = sbr.rel (%p342) target = $region40
        $region39: #{tpu_custom_call.1} parent=15 // pred_region
          %s345 = sand.u32 %s25, 1
          %s346 = scalar_lea.sflag [#allocation11], %s345
          %s347 = sand.u32 %s165, 1
          %s348 = smul.addr %s347, 8
          %s349 = scalar_lea.vmem [#allocation10], %s348
          %s351 = ssub.s32 128, 128
          %352 = vsyncadd %s346, %s351
          %s353 = smul.addr %s25, 128
          %s354 = scalar_lea.hbm %s5, %s353
          %s356 = sshll.u32 %s349, 4
          %s357 = int_to_ptr.vmem [resolvable:$true] %s356
          %359 = dma.hbm_to_vmem [thread:$0]  %s354, 128, %s357, %s346
        $region40: #{tpu_custom_call.1} parent=15 // pred_fallthru
          _
        // Predicated region
        $region41: #{tpu_custom_call.1} parent=15 // pred_check
          %p360 = pneg %p201
        $region42: #{tpu_custom_call.1} parent=15 // pred_check_branch
          %362 = sbr.rel (%p360) target = $region44
        $region43: #{tpu_custom_call.1} parent=15 // pred_region
          %s363 = sand.u32 %s25, 1
          %s364 = scalar_lea.sflag [#allocation11], %s363
          %s365 = sand.u32 %s191, 1
          %s366 = smul.addr %s365, 8
          %s367 = scalar_lea.vmem [#allocation12], %s366
          %s369 = ssub.s32 128, 128
          %370 = vsyncadd %s364, %s369
          %s371 = smul.addr %s25, 128
          %s372 = scalar_lea.hbm %s6, %s371
          %s374 = sshll.u32 %s367, 4
          %s375 = int_to_ptr.vmem [resolvable:$true] %s374
          %377 = dma.hbm_to_vmem [thread:$0]  %s372, 128, %s375, %s364
        $region44: #{tpu_custom_call.1} parent=15 // pred_fallthru
          _
      $region16: #{tpu_custom_call.1} parent=5 // pred_fallthru
        _
      %p378 = scmp.le.s32.totalorder 1, %s25
      %p379 = scmp.lt.s32.totalorder %s25, 4
      %p380 = pnand %p378, %p379
      %p381 = pneg %p380
      // Predicated region
      $region45: #{tpu_custom_call.1} parent=5 // pred_check
        _
      $region46: #{tpu_custom_call.1} parent=5 // pred_check_branch
        %383 = sbr.rel (%p380) target = $region48
      $region47: #{tpu_custom_call.1} parent=5 // pred_region
        %s384 = ssub.s32 %s25, 1
        %s385 = sand.u32 %s38, 1
        %s386 = scalar_lea.sflag [#allocation3], %s385
        %s387 = sand.u32 %s38, 1
        %s388 = smul.addr %s387, 8
        %s389 = scalar_lea.vmem [#allocation2], %s388
        // Predicated region
        $region49: #{tpu_custom_call.1} parent=47 // pred_check
          %p390 = pneg %p51
        $region50: #{tpu_custom_call.1} parent=47 // pred_check_branch
          %392 = sbr.rel (%p390) target = $region52
        $region51: #{tpu_custom_call.1} parent=47 // pred_region
          %393 = dma.done %s386, 128
        $region52: #{tpu_custom_call.1} parent=47 // pred_fallthru
          _
        %s394 = sand.u32 %s30, 1
        %s395 = scalar_lea.sflag [#allocation5], %s394
        %s396 = sand.u32 %s64, 1
        %s397 = smul.addr %s396, 8
        %s398 = scalar_lea.vmem [#allocation4], %s397
        // Predicated region
        $region53: #{tpu_custom_call.1} parent=47 // pred_check
          %p399 = pneg %p77
        $region54: #{tpu_custom_call.1} parent=47 // pred_check_branch
          %401 = sbr.rel (%p399) target = $region56
        $region55: #{tpu_custom_call.1} parent=47 // pred_region
          %402 = dma.done %s395, 128
        $region56: #{tpu_custom_call.1} parent=47 // pred_fallthru
          _
        %s403 = sand.u32 %s30, 1
        %s404 = scalar_lea.sflag [#allocation5], %s403
        %s405 = sand.u32 %s90, 1
        %s406 = smul.addr %s405, 8
        %s407 = scalar_lea.vmem [#allocation6], %s406
        // Predicated region
        $region57: #{tpu_custom_call.1} parent=47 // pred_check
          %p408 = pneg %p103
        $region58: #{tpu_custom_call.1} parent=47 // pred_check_branch
          %410 = sbr.rel (%p408) target = $region60
        $region59: #{tpu_custom_call.1} parent=47 // pred_region
          %411 = dma.done %s404, 128
        $region60: #{tpu_custom_call.1} parent=47 // pred_fallthru
          _
        %s412 = sand.u32 %s30, 1
        %s413 = scalar_lea.sflag [#allocation8], %s412
        %s414 = sand.u32 %s116, 1
        %s415 = smul.addr %s414, 8
        %s416 = scalar_lea.vmem [#allocation7], %s415
        // Predicated region
        $region61: #{tpu_custom_call.1} parent=47 // pred_check
          %p417 = pneg %p129
        $region62: #{tpu_custom_call.1} parent=47 // pred_check_branch
          %419 = sbr.rel (%p417) target = $region64
        $region63: #{tpu_custom_call.1} parent=47 // pred_region
          %420 = dma.done %s413, 128
        $region64: #{tpu_custom_call.1} parent=47 // pred_fallthru
          _
        %s421 = sand.u32 %s30, 1
        %s422 = scalar_lea.sflag [#allocation8], %s421
        %s423 = sand.u32 %s142, 1
        %s424 = smul.addr %s423, 8
        %s425 = scalar_lea.vmem [#allocation9], %s424
        // Predicated region
        $region65: #{tpu_custom_call.1} parent=47 // pred_check
          %p426 = pneg %p155
        $region66: #{tpu_custom_call.1} parent=47 // pred_check_branch
          %428 = sbr.rel (%p426) target = $region68
        $region67: #{tpu_custom_call.1} parent=47 // pred_region
          %429 = dma.done %s422, 128
        $region68: #{tpu_custom_call.1} parent=47 // pred_fallthru
          _
        %s430 = sand.u32 %s30, 1
        %s431 = scalar_lea.sflag [#allocation11], %s430
        %s432 = sand.u32 %s168, 1
        %s433 = smul.addr %s432, 8
        %s434 = scalar_lea.vmem [#allocation10], %s433
        // Predicated region
        $region69: #{tpu_custom_call.1} parent=47 // pred_check
          %p435 = pneg %p181
        $region70: #{tpu_custom_call.1} parent=47 // pred_check_branch
          %437 = sbr.rel (%p435) target = $region72
        $region71: #{tpu_custom_call.1} parent=47 // pred_region
          %438 = dma.done %s431, 128
        $region72: #{tpu_custom_call.1} parent=47 // pred_fallthru
          _
        %s439 = sand.u32 %s30, 1
        %s440 = scalar_lea.sflag [#allocation11], %s439
        %s441 = sand.u32 %s194, 1
        %s442 = smul.addr %s441, 8
        %s443 = scalar_lea.vmem [#allocation12], %s442
        // Predicated region
        $region73: #{tpu_custom_call.1} parent=47 // pred_check
          %p444 = pneg %p207
        $region74: #{tpu_custom_call.1} parent=47 // pred_check_branch
          %446 = sbr.rel (%p444) target = $region76
        $region75: #{tpu_custom_call.1} parent=47 // pred_region
          %447 = dma.done %s440, 128
        $region76: #{tpu_custom_call.1} parent=47 // pred_fallthru
          _
        %s448 = sand.u32 %s38, 1
        %s449 = scalar_lea.sflag [#allocation3], %s448
        %s450 = sand.u32 %s38, 1
        %s451 = smul.addr %s450, 8
        %s452 = scalar_lea.vmem [#allocation2], %s451
        %p453 = pneg %p51
        %p454 = pneg %p48
        %s455 = sand.u32 %s30, 1
        %s456 = scalar_lea.sflag [#allocation5], %s455
        %s457 = sand.u32 %s64, 1
        %s458 = smul.addr %s457, 8
        %s459 = scalar_lea.vmem [#allocation4], %s458
        %p460 = pneg %p77
        %p461 = pneg %p74
        %s462 = sand.u32 %s30, 1
        %s463 = scalar_lea.sflag [#allocation5], %s462
        %s464 = sand.u32 %s90, 1
        %s465 = smul.addr %s464, 8
        %s466 = scalar_lea.vmem [#allocation6], %s465
        %p467 = pneg %p103
        %p468 = pneg %p100
        %s469 = sand.u32 %s30, 1
        %s470 = scalar_lea.sflag [#allocation8], %s469
        %s471 = sand.u32 %s116, 1
        %s472 = smul.addr %s471, 8
        %s473 = scalar_lea.vmem [#allocation7], %s472
        %p474 = pneg %p129
        %p475 = pneg %p126
        %s476 = sand.u32 %s30, 1
        %s477 = scalar_lea.sflag [#allocation8], %s476
        %s478 = sand.u32 %s142, 1
        %s479 = smul.addr %s478, 8
        %s480 = scalar_lea.vmem [#allocation9], %s479
        %p481 = pneg %p155
        %p482 = pneg %p152
        %s483 = sand.u32 %s30, 1
        %s484 = scalar_lea.sflag [#allocation11], %s483
        %s485 = sand.u32 %s168, 1
        %s486 = smul.addr %s485, 8
        %s487 = scalar_lea.vmem [#allocation10], %s486
        %p488 = pneg %p181
        %p489 = pneg %p178
        %s490 = sand.u32 %s30, 1
        %s491 = scalar_lea.sflag [#allocation11], %s490
        %s492 = sand.u32 %s194, 1
        %s493 = smul.addr %s492, 8
        %s494 = scalar_lea.vmem [#allocation12], %s493
        %p495 = pneg %p207
        %p496 = pneg %p204
        %p497 = pneg %p233
        %p498 = pneg %p230
        %p499 = scmp.lt.s32.totalorder %s30, 2
        %s500 = scalar_select %p499, %s30, 2
        %s501 = smul.addr %s500, 8
        %s502 = scalar_lea.vmem %s7, %s501
        %p503 = scmp.lt.s32.totalorder %s30, 2
        %s504 = scalar_select %p503, %s30, 2
        %s505 = smul.addr %s504, 8
        %s506 = scalar_lea.vmem %s7, %s505
        %v507 = vld [vmem:[%s389] sm:$0xff]
        %v508 = vld [vmem:[%s398] sm:$0xff]
        %v509 = vld [vmem:[%s407] sm:$0xff]
        %v510 = vld [vmem:[%s416] sm:$0xff]
        %v511 = vsub.f32 %v507, %v508
        %v512 = vmul.f32 %v511, %v510
        %513 = vadd.xlane.f32.xlu0 %v512
        %v514 = vpop.xlane.xlu0 %513
        %v515 = vadd.f32 %v511, %v509
        %v516 = vmul.f32 %v514, %v510
        %v517 = vsub.f32 %v515, %v516
        %v518 = vmul.f32 %v517, %v517
        %519 = vadd.xlane.f32.xlu0 %v518
        %v520 = vpop.xlane.xlu0 %519
        %v521 = vrsqrt.pop %v520
        %v522 = vmul.f32 %v520, %v521
        %vm523 = vcmp.eq.f32.partialorder %v520, inf
        %v524 = vsel %vm523, %v520, %v522
        %vm525 = vcmp.eq.f32.partialorder %v520, 0.0
        %v526 = vand.u32 %v520, 2147483648
        %v527 = vsel %vm525, %v526, %v524
        %v528 = vld [vmem:[%s425] sm:$0xff]
        %v529 = vld [vmem:[%s434] sm:$0xff]
        %v530 = vld [vmem:[%s443] sm:$0xff]
        %v531 = vand.u32 2147483647, %v530
        %vm532 = vcmp.le.f32.partialorder %v531, 0.7853982
        %vm533 = vcmp.lt.s32.totalorder %v530, 0
        %v534 = vand.u32 %v530, 2139095040
        %v535 = vshrl.u32 %v534, 23
        %v536 = vsub.s32 %v535, 127
        %v537 = vand.u32 2147483647, %v530
        %v538 = vand.u32 %v537, 8388607
        %v539 = vor.u32 %v538, 8388608
        %v540 = vsub.s32 0, %v539
        %v541 = vadd.s32 %v536, 1
        %vm542 = vcmp.gt.s32.totalorder %v541, 0
        %v543 = vsel %vm542, %v541, 0
        %v544 = vshrl.u32 %v543, 5
        %v545 = vand.u32 %v543, 31
        %v546 = vsub.s32 32, %v545
        %v547 = vshrl.u32 683565275, %v546
        %v548 = vshll.u32 683565275, %v545
        %v549 = vshrl.u32 2475754826, %v546
        %v550 = vor.u32 %v548, %v549
        %v551 = vshll.u32 2475754826, %v545
        %v552 = vshrl.u32 2131351028, %v546
        %v553 = vor.u32 %v551, %v552
        %v554 = vshll.u32 2131351028, %v545
        %v555 = vshrl.u32 2102212464, %v546
        %v556 = vor.u32 %v554, %v555
        %v557 = vshll.u32 2102212464, %v545
        %v558 = vshrl.u32 920167782, %v546
        %v559 = vor.u32 %v557, %v558
        %v560 = vshll.u32 920167782, %v545
        %v561 = vshrl.u32 1326507024, %v546
        %v562 = vor.u32 %v560, %v561
        %vm563 = vcmp.lt.s32.totalorder %v544, 1
        %vm564 = vcmp.lt.s32.totalorder %v544, 2
        %vm565 = vcmp.lt.s32.totalorder %v544, 3
        %vm566 = vcmp.lt.s32.totalorder %v544, 4
        %v567 = vsel %vm563, %v547, %v550
        %v568 = vsel %vm566, %v556, 2102212464
        %v569 = vsel %vm565, %v553, %v568
        %v570 = vsel %vm564, %v567, %v569
        %v571 = vsel %vm563, %v550, %v553
        %v572 = vsel %vm566, %v559, 920167782
        %v573 = vsel %vm565, %v556, %v572
        %v574 = vsel %vm564, %v571, %v573
        %v575 = vsel %vm563, %v553, %v556
        %v576 = vsel %vm566, %v562, 1326507024
        %v577 = vsel %vm565, %v559, %v576
        %v578 = vsel %vm564, %v575, %v577
        %v579 = vshll.u32 %v539, 8
        %v580 = vmul.u32.u64.compose %v579, %v578
        %v581 = vextract.low.u32 %v580
        %v582 = vextract.high.u32 %v580
        %v583 = vmul.u32.u64.compose %v579, %v574
        %v584 = vextract.low.u32 %v583
        %v585 = vextract.high.u32 %v583
        %v586 = vmul.u32 %v579, %v570
        %v587 = vadd.s32 %v582, %v584
        %vm588 = vc.u32 %v582, %v584
        %v589 = vadd.s32 %v585, 1
        %v590 = vsel %vm588, %v589, %v585
        %v591 = vadd.s32 %v586, %v590
        %v592 = vadd.s32 %v591, 536870912
        %v593 = vshrl.u32 %v592, 30
        %v594 = vshll.u32 %v593, 30
        %v595 = vsub.s32 %v591, %v594
        %vm596 = vcmp.lt.s32.totalorder %v595, 0
        %v597 = vsub.s32 0, %v595
        %v598 = vsel %vm596, %v597, %v595
        %v599 = vclz %v598
        %v600 = vsub.s32 %v599, 2
        %vm601 = vcmp.gt.s32.totalorder 0, %v600
        %v602 = vsel %vm601, 0, %v600
        %v603 = vsub.s32 32, %v602
        %v604 = vshll.u32 %v595, %v602
        %v605 = vshrl.u32 %v587, %v603
        %v606 = vor.u32 %v604, %v605
        %v607 = vsub.s32 4294967266, %v602
        %v608 = vadd.s32 %v607, 127
        %v609 = vshll.u32 %v608, 23
        %v610 = vor.u32 4788187, %v609
        %v611 = vand.u32 2147483647, %v610
        %v613 = vcvt.s32.f32 %v606
        %v614 = vmul.f32 %v613, %v611
        %v615 = vxor.u32 %v614, 2147483648
        %v616 = vsel %vm533, %v615, %v614
        %v617 = vsub.s32 4, %v593
        %v618 = vsel %vm533, %v617, %v593
        %v619 = vsel %vm532, %v530, %v616
        %v620 = vsel %vm532, 0, %v618
        %v621 = vcosq.f32.pop %v619
        %v622 = vsinq.f32.pop %v619
        %vm623 = vweird.f32 %v530
        %v624 = vand.u32 %v620, 3
        %vm625 = vcmp.lt.s32.totalorder %v624, 2
        %vm626 = vcmp.eq.s32.totalorder %v624, 0
        %v627 = vxor.u32 %v622, 2147483648
        %v628 = vsel %vm626, %v621, %v627
        %vm629 = vcmp.eq.s32.totalorder %v624, 2
        %v630 = vxor.u32 %v621, 2147483648
        %v631 = vsel %vm629, %v630, %v622
        %v632 = vsel %vm625, %v628, %v631
        %v633 = vsel %vm623, nan, %v632
        %v634 = vand.u32 2147483647, %v530
        %vm635 = vcmp.le.f32.partialorder %v634, 0.7853982
        %vm636 = vcmp.lt.s32.totalorder %v530, 0
        %v637 = vand.u32 %v530, 2139095040
        %v638 = vshrl.u32 %v637, 23
        %v639 = vsub.s32 %v638, 127
        %v640 = vand.u32 2147483647, %v530
        %v641 = vand.u32 %v640, 8388607
        %v642 = vor.u32 %v641, 8388608
        %v643 = vsub.s32 0, %v642
        %v644 = vadd.s32 %v639, 1
        %vm645 = vcmp.gt.s32.totalorder %v644, 0
        %v646 = vsel %vm645, %v644, 0
        %v647 = vshrl.u32 %v646, 5
        %v648 = vand.u32 %v646, 31
        %v649 = vsub.s32 32, %v648
        %v650 = vshrl.u32 683565275, %v649
        %v651 = vshll.u32 683565275, %v648
        %v652 = vshrl.u32 2475754826, %v649
        %v653 = vor.u32 %v651, %v652
        %v654 = vshll.u32 2475754826, %v648
        %v655 = vshrl.u32 2131351028, %v649
        %v656 = vor.u32 %v654, %v655
        %v657 = vshll.u32 2131351028, %v648
        %v658 = vshrl.u32 2102212464, %v649
        %v659 = vor.u32 %v657, %v658
        %v660 = vshll.u32 2102212464, %v648
        %v661 = vshrl.u32 920167782, %v649
        %v662 = vor.u32 %v660, %v661
        %v663 = vshll.u32 920167782, %v648
        %v664 = vshrl.u32 1326507024, %v649
        %v665 = vor.u32 %v663, %v664
        %vm666 = vcmp.lt.s32.totalorder %v647, 1
        %vm667 = vcmp.lt.s32.totalorder %v647, 2
        %vm668 = vcmp.lt.s32.totalorder %v647, 3
        %vm669 = vcmp.lt.s32.totalorder %v647, 4
        %v670 = vsel %vm666, %v650, %v653
        %v671 = vsel %vm669, %v659, 2102212464
        %v672 = vsel %vm668, %v656, %v671
        %v673 = vsel %vm667, %v670, %v672
        %v674 = vsel %vm666, %v653, %v656
        %v675 = vsel %vm669, %v662, 920167782
        %v676 = vsel %vm668, %v659, %v675
        %v677 = vsel %vm667, %v674, %v676
        %v678 = vsel %vm666, %v656, %v659
        %v679 = vsel %vm669, %v665, 1326507024
        %v680 = vsel %vm668, %v662, %v679
        %v681 = vsel %vm667, %v678, %v680
        %v682 = vshll.u32 %v642, 8
        %v683 = vmul.u32.u64.compose %v682, %v681
        %v684 = vextract.low.u32 %v683
        %v685 = vextract.high.u32 %v683
        %v686 = vmul.u32.u64.compose %v682, %v677
        %v687 = vextract.low.u32 %v686
        %v688 = vextract.high.u32 %v686
        %v689 = vmul.u32 %v682, %v673
        %v690 = vadd.s32 %v685, %v687
        %vm691 = vc.u32 %v685, %v687
        %v692 = vadd.s32 %v688, 1
        %v693 = vsel %vm691, %v692, %v688
        %v694 = vadd.s32 %v689, %v693
        %v695 = vadd.s32 %v694, 536870912
        %v696 = vshrl.u32 %v695, 30
        %v697 = vshll.u32 %v696, 30
        %v698 = vsub.s32 %v694, %v697
        %vm699 = vcmp.lt.s32.totalorder %v698, 0
        %v700 = vsub.s32 0, %v698
        %v701 = vsel %vm699, %v700, %v698
        %v702 = vclz %v701
        %v703 = vsub.s32 %v702, 2
        %vm704 = vcmp.gt.s32.totalorder 0, %v703
        %v705 = vsel %vm704, 0, %v703
        %v706 = vsub.s32 32, %v705
        %v707 = vshll.u32 %v698, %v705
        %v708 = vshrl.u32 %v690, %v706
        %v709 = vor.u32 %v707, %v708
        %v710 = vsub.s32 4294967266, %v705
        %v711 = vadd.s32 %v710, 127
        %v712 = vshll.u32 %v711, 23
        %v713 = vor.u32 4788187, %v712
        %v714 = vand.u32 2147483647, %v713
        %v716 = vcvt.s32.f32 %v709
        %v717 = vmul.f32 %v716, %v714
        %v718 = vxor.u32 %v717, 2147483648
        %v719 = vsel %vm636, %v718, %v717
        %v720 = vsub.s32 4, %v696
        %v721 = vsel %vm636, %v720, %v696
        %v722 = vsel %vm635, %v530, %v719
        %v723 = vsel %vm635, 0, %v721
        %v724 = vcosq.f32.pop %v722
        %v725 = vsinq.f32.pop %v722
        %vm726 = vweird.f32 %v530
        %v727 = vadd.s32 %v723, 3
        %v728 = vand.u32 %v727, 3
        %vm729 = vcmp.lt.s32.totalorder %v728, 2
        %vm730 = vcmp.eq.s32.totalorder %v728, 0
        %v731 = vxor.u32 %v725, 2147483648
        %v732 = vsel %vm730, %v724, %v731
        %vm733 = vcmp.eq.s32.totalorder %v728, 2
        %v734 = vxor.u32 %v724, 2147483648
        %v735 = vsel %vm733, %v734, %v725
        %v736 = vsel %vm729, %v732, %v735
        %v737 = vsel %vm726, nan, %v736
        %v738 = vadd.f32 %v633, %v737
        %v739 = vmul.f32 %v528, %v738
        %v740 = vadd.f32 %v739, %v530
        %v741 = vsub.f32 %v740, %v529
        %v742 = vmul.f32 %v741, %v741
        %743 = vadd.xlane.f32.xlu0 %v742
        %v744 = vpop.xlane.xlu0 %743
        %v745 = vrsqrt.pop %v744
        %v746 = vmul.f32 %v744, %v745
        %vm747 = vcmp.eq.f32.partialorder %v744, inf
        %v748 = vsel %vm747, %v744, %v746
        %vm749 = vcmp.eq.f32.partialorder %v744, 0.0
        %v750 = vand.u32 %v744, 2147483648
        %v751 = vsel %vm749, %v750, %v748
        %v752 = vadd.f32 %v527, %v751
        %vm753 = vcmask 7168
        %754 = vst.msk [vmem:[%s506] sm:$0xff] %vm753, %v752
        %p755 = scmp.lt.s32.totalorder %s30, 2
        %s756 = scalar_select %p755, %s30, 2
        %s757 = smul.addr %s756, 8
        %s758 = scalar_lea.vmem %s7, %s757
        // Predicated region
        $region77: #{tpu_custom_call.1} parent=47 // pred_check
          %p759 = pneg %p230
        $region78: #{tpu_custom_call.1} parent=47 // pred_check_branch
          %761 = sbr.rel (%p759) target = $region80
        $region79: #{tpu_custom_call.1} parent=47 // pred_region
          _
        $region80: #{tpu_custom_call.1} parent=47 // pred_fallthru
          _
      $region48: #{tpu_custom_call.1} parent=5 // pred_fallthru
        _
      %p762 = scmp.le.s32.totalorder 2, %s25
      // Predicated region
      $region81: #{tpu_custom_call.1} parent=5 // pred_check
        %p763 = pneg %p762
      $region82: #{tpu_custom_call.1} parent=5 // pred_check_branch
        %765 = sbr.rel (%p763) target = $region84
      $region83: #{tpu_custom_call.1} parent=5 // pred_region
        %s766 = ssub.s32 %s25, 2
        // Predicated region
        $region85: #{tpu_custom_call.1} parent=83 // pred_check
          %p767 = pneg %p236
        $region86: #{tpu_custom_call.1} parent=83 // pred_check_branch
          %769 = sbr.rel (%p767) target = $region88
        $region87: #{tpu_custom_call.1} parent=83 // pred_region
          %p770 = scmp.lt.s32.totalorder %s31, 2
          %s771 = scalar_select %p770, %s31, 2
          %s772 = smul.addr %s771, 8
          %s773 = scalar_lea.vmem %s7, %s772
        $region88: #{tpu_custom_call.1} parent=83 // pred_fallthru
          _
      $region84: #{tpu_custom_call.1} parent=5 // pred_fallthru
        _
    $region6: #{tpu_custom_call.1} parent=1 // loop_footer
      %s29 = sadd.s32 1, %s25
    $region7: #{tpu_custom_call.1} parent=1 // loop_footer_branch
      %24 = sbr.rel target = $region3
    $region8: #{tpu_custom_call.1} parent=1 // loop_exit
      _
    %774 = vsyncpa [#allocation3], 1
    %s775 = scalar_lea.sflag [#allocation3], 1
    %776 = vsyncpa %s775, 1
    %777 = vsyncpa [#allocation5], 1
    %s778 = scalar_lea.sflag [#allocation5], 1
    %779 = vsyncpa %s778, 1
    %780 = vsyncpa [#allocation8], 1
    %s781 = scalar_lea.sflag [#allocation8], 1
    %782 = vsyncpa %s781, 1
    %783 = vsyncpa [#allocation11], 1
    %s784 = scalar_lea.sflag [#allocation11], 1
    %785 = vsyncpa %s784, 1

</llo_original>
